<compile_context>
chip_gen: v6e
topology: v6e:2x2x1
jax: 0.10.0
libtpu: 0.0.40
codegen_flags: <defaults>
</compile_context>

<pallas_src>
import functools

import jax
import jax.numpy as jnp
from jax import lax
from jax.experimental import pallas as pl
from jax.experimental.pallas import tpu as pltpu


def _round_up(x: int, m: int) -> int:
    return (x + m - 1) // m * m


def _bigram_kernel(tok_ref, emb_ref, out_ref, *, rows_per_step):
    # tok_ref: (N_pad,) int32 in SMEM (scalar prefetch) — drives the gather.
    # emb_ref: (V, V_pad) embedding table, VMEM-resident (constant index_map
    #          => fetched from HBM once and kept across all grid steps).
    # out_ref: (rows_per_step, V_pad) logits block for this chunk of tokens.
    base = pl.program_id(0) * rows_per_step

    def body(r, carry):
        tok = tok_ref[base + r]                       # scalar SMEM read
        # Dynamic-row gather from the resident table into the output slab.
        out_ref[pl.ds(r, 1), :] = emb_ref[pl.ds(tok, 1), :]
        return carry

    lax.fori_loop(0, rows_per_step, body, 0)


def bigram_forward(tokens, emb, *, rows_per_step=256):
    """tokens: (B, T) int ids, emb: (V, V) float -> (B, T, V) logits."""
    B, T = tokens.shape
    V, V2 = emb.shape
    assert V == V2, "bigram embedding table must be square (vocab, vocab)"
    N = B * T

    # Lane-dense output: pad the vocab (lane) dim up to a multiple of 128.
    V_pad = _round_up(V, 128)
    if V_pad != V:
        emb = jnp.pad(emb, ((0, 0), (0, V_pad - V)))

    itemsize = jnp.dtype(emb.dtype).itemsize
    table_bytes = V * V_pad * itemsize
    # VMEM-resident-table path; 16 MiB table cap keeps double-buffered table +
    # output blocks inside v7x's 64 MiB VMEM as well as v5e/v6e.
    assert table_bytes <= (16 << 20), "vocab too large for VMEM-resident path"
    # TODO(synk): huge-vocab path (table not VMEM-resident) would instead issue
    # manual per-row HBM DMAs with a ring of DMA semaphores (memory_space=pl.ANY).

    # Batch R rows per grid step (multiple of 8 for sublane density); shrink
    # for tiny inputs so we don't pad 2x8 tokens up to 256.
    R = min(rows_per_step, max(8, _round_up(N, 8)))
    N_pad = _round_up(N, R)

    # Clamp ids so a bad id cannot drive an out-of-bounds gather (PyTorch
    # nn.Embedding would raise).  Pad with id 0; padded rows are sliced away.
    tok1d = jnp.clip(tokens.reshape(N).astype(jnp.int32), 0, V - 1)
    if N_pad != N:
        tok1d = jnp.pad(tok1d, (0, N_pad - N))
    # NOTE: scalar prefetch puts all N_pad ids in SMEM; fine for moderate N
    # (demo N=16).  Production-sized N (>~256K tokens) should switch to
    # per-chunk id blocks instead.

    out_block_bytes = R * V_pad * itemsize
    vmem_limit = 2 * table_bytes + 2 * out_block_bytes + (4 << 20)
    vmem_limit = int(min(max(vmem_limit, 16 << 20), 100 << 20))

    grid_spec = pltpu.PrefetchScalarGridSpec(
        num_scalar_prefetch=1,            # tok1d -> SMEM, feeds the gather
        grid=(N_pad // R,),
        in_specs=[
            # Full-extent table, constant block index => DMA'd once, resident.
            pl.BlockSpec((V, V_pad), lambda c, tok: (0, 0)),
        ],
        # Sublane/lane-dense (R, V_pad) output slab per step.
        out_specs=pl.BlockSpec((R, V_pad), lambda c, tok: (c, 0)),
    )

    out = pl.pallas_call(
        functools.partial(_bigram_kernel, rows_per_step=R),
        out_shape=jax.ShapeDtypeStruct((N_pad, V_pad), emb.dtype),
        grid_spec=grid_spec,
        compiler_params=pltpu.CompilerParams(
            dimension_semantics=("parallel",),   # chunks independent; v7x 2-TC split
            vmem_limit_bytes=vmem_limit),
    )(tok1d, emb)

    return out[:N, :V].reshape(B, T, V)


if __name__ == "__main__":
    vocab_size = 128
    B, T = 2, 8

    key = jax.random.PRNGKey(0)
    k_emb, k_tok = jax.random.split(key)

    # Deterministic parameter init (nn.Embedding default ~ N(0, 1)).
    emb = jax.random.normal(k_emb, (vocab_size, vocab_size), dtype=jnp.float32)
    tokens = jax.random.randint(k_tok, (B, T), 0, vocab_size, dtype=jnp.int32)

    logits = bigram_forward(tokens, emb)
    logits = jax.block_until_ready(logits)

    # Reference: plain embedding lookup.  Kernel is a pure row copy -> bit-exact.
    ref = emb[tokens]
    assert logits.shape == (B, T, vocab_size)
    assert jnp.array_equal(logits, ref)

    # TODO(synk): `generate` is a host-side autoregressive torch.multinomial
    # sampling loop, not a kernel hot path, so it is not ported.
    print("KERNEL_OK")
</pallas_src>

<mosaic_0001>
module attributes {stable_mosaic.version = 11 : i64} {
  func.func @_bigram_kernel(%arg0: i32, %arg1: memref<16xi32, #tpu.memory_space<smem>>, %arg2: memref<128x128xf32, #tpu.memory_space<vmem>>, %arg3: memref<16x128xf32, #tpu.memory_space<vmem>>) attributes {dimension_semantics = [#tpu.dimension_semantics<parallel>], iteration_bounds = array<i64: 1>, scalar_prefetch = 1 : i64, scratch_operands = 0 : i64, tpu.core_type = #tpu.core_type<tc>, window_params = [{pipeline_mode = #tpu.pipeline_mode<synchronous>, transform_indices = @transform_0, window_bounds = array<i64: 128, 128>}, {transform_indices = @transform_1, window_bounds = array<i64: 16, 128>}]} {
    %c16_i32 = arith.constant 16 : i32
    %0 = arith.muli %arg0, %c16_i32 : i32
    %c0_i32 = arith.constant 0 : i32
    %c16_i32_0 = arith.constant 16 : i32
    %1 = arith.addi %c0_i32, %c16_i32_0 : i32
    %c1_i32 = arith.constant 1 : i32
    scf.for %arg4 = %c0_i32 to %1 step %c1_i32  : i32 {
      %2 = arith.addi %0, %arg4 : i32
      %3 = arith.index_cast %2 : i32 to index
      %4 = memref.load %arg1[%3] : memref<16xi32, #tpu.memory_space<smem>>
      %5 = arith.index_cast %4 : i32 to index
      %c0 = arith.constant 0 : index
      %6 = vector.load %arg2[%5, %c0] : memref<128x128xf32, #tpu.memory_space<vmem>>, vector<1x128xf32>
      %7 = arith.index_cast %arg4 : i32 to index
      %c0_2 = arith.constant 0 : index
      %8 = vector.load %arg3[%7, %c0_2] : memref<16x128xf32, #tpu.memory_space<vmem>>, vector<1x128xf32>
      tpu.vector_store %arg3[%7, %c0_2], %6 {strides = array<i32>} : memref<16x128xf32, #tpu.memory_space<vmem>>, vector<1x128xf32>,
    }
    %c16_i32_1 = arith.constant 16 : i32
    return
  }
  func.func @transform_0(%arg0: i32, %arg1: memref<16xi32, #tpu.memory_space<smem>>) -> (i32, i32) {
    %c0_i32 = arith.constant 0 : i32
    %c0_i32_0 = arith.constant 0 : i32
    %c0_i32_1 = arith.constant 0 : i32
    return %c0_i32, %c0_i32_0 : i32, i32
  }
  func.func @transform_1(%arg0: i32, %arg1: memref<16xi32, #tpu.memory_space<smem>>) -> (i32, i32) {
    %c0_i32 = arith.constant 0 : i32
    %c0_i32_0 = arith.constant 0 : i32
    return %arg0, %c0_i32 : i32, i32
  }
}

</mosaic_0001>

<llo_original>
// kernel: tpu_custom_call.1
$region0: #{tpu_custom_call.1}
  #allocation0 [shape = 'u32[]', space=smem, size = 0x4, offset = 0x4, fixed_abs, tag = 'smem constant byte address 0x4 - core index']
  #allocation1 [shape = 'u32[144,128]{1,0:T(1,128)}', space=vmem, size = 0x12000, scoped, tag = 'internal scratch']
  #allocation2 [shape = 's32[1]{0}', space=sflag, size = 0x4, scoped, tag = 'scoped memory for tpu_custom_call.1']
  #allocation3 [shape = 'u8[512]{0}', space=smem, size = 0x200, scoped, tag = 'prefetched SMEM operand 0']
  %s0 = inlined_call_operand.hbm [shape: s32[16], index: 0, kind: input, shape index: {}]
  %s1 = inlined_call_operand.hbm [shape: f32[128,128], index: 1, kind: input, shape index: {}]
  %s2 = inlined_call_operand.hbm [shape: f32[16,128], index: 2, kind: output, shape index: {}]
  %s3 = sld [smem:[#allocation0]]
  $region25: #{tpu_custom_call.1} parent=0
    _
  %s5 = ssub.s32 1, %s3
  %s6 = scalar_select 0, %s5, %s3
  %8 = dma.hbm_to_smem %s0, 16, [#allocation3], [#allocation2]
  %9 = dma.done [#allocation2], 16
  %10 = sfence
  $region1: #{tpu_custom_call.1} parent=0
    #allocation4 [shape = 'u8[65536]{0}', space=vmem, size = 0x10000, scoped, tag = 'input window, operand 1, single buffered']
    #allocation5 [shape = 's32[1]{0}', space=sflag, size = 0x4, scoped, tag = 'scoped memory for tpu_custom_call.1']
    #allocation6 [shape = 's32[1]{0}', space=sflag, size = 0x4, scoped, tag = 'scoped memory for tpu_custom_call.1']
    #allocation7 [shape = 'u8[8192]{0}', space=vmem, size = 0x2000, scoped, tag = 'output window, operand 0, single buffered']
    %11 = vsyncpa [#allocation5], 0
    %12 = vsyncpa [#allocation6], 0
    // Predicated region
    $region2: #{tpu_custom_call.1} parent=1 // pred_check
      _
    $region3: #{tpu_custom_call.1} parent=1 // pred_check_branch
      %14 = sbr.rel (0) target = $region5
    $region4: #{tpu_custom_call.1} parent=1 // pred_region
      %s16 = ssub.s32 2048, 2048
      %17 = vsyncadd [#allocation5], %s16
      %s18 = sshll.u32 [#allocation4], 4
      %s19 = int_to_ptr.vmem [resolvable:$true] %s18
      %24 = dma.hbm_to_vmem [thread:$0]  %s1, 2048, %s19, [#allocation5], 128, 128, 8
    $region5: #{tpu_custom_call.1} parent=1 // pred_fallthru
      _
    // Predicated region
    $region6: #{tpu_custom_call.1} parent=1 // pred_check
      _
    $region7: #{tpu_custom_call.1} parent=1 // pred_check_branch
      %26 = sbr.rel (0) target = $region9
    $region8: #{tpu_custom_call.1} parent=1 // pred_region
      %27 = dma.done [#allocation5], 2048
    $region9: #{tpu_custom_call.1} parent=1 // pred_fallthru
      _
    %s28 = smul.u32 0, 16
    loop: start=0, step=1, limit=16
    $region10: #{tpu_custom_call.1} parent=1 // loop_pre_header
      _
    $region11: #{tpu_custom_call.1} parent=1 // loop_header
      %s30 = sphi 0, %s34
      %p31 = scmp.ge.s32.totalorder %s30, 16
    $region12: #{tpu_custom_call.1} parent=1 // loop_header_branch
      %33 = sbr.rel (%p31) target = $region16
    $region13: #{tpu_custom_call.1} parent=1 // loop_body
      %s35 = sadd.s32 %s28, %s30
      %s36 = sld [smem:[#allocation3 + %s35]]
      %s37 = scalar_lea.vmem [#allocation4], %s36
      %v38 = vld [vmem:[%s37] sm:$0x1]
      %s39 = scalar_lea.vmem [#allocation7], %s30
      %40 = vst [vmem:[%s39] sm:$0x1] %v38
    $region14: #{tpu_custom_call.1} parent=1 // loop_footer
      %s34 = sadd.s32 1, %s30
    $region15: #{tpu_custom_call.1} parent=1 // loop_footer_branch
      %29 = sbr.rel target = $region11
    $region16: #{tpu_custom_call.1} parent=1 // loop_exit
      _
    // Predicated region
    $region17: #{tpu_custom_call.1} parent=1 // pred_check
      _
    $region18: #{tpu_custom_call.1} parent=1 // pred_check_branch
      %42 = sbr.rel (0) target = $region20
    $region19: #{tpu_custom_call.1} parent=1 // pred_region
      %s44 = ssub.s32 256, 256
      %45 = vsyncadd [#allocation6], %s44
      %s46 = sshll.u32 [#allocation7], 4
      %s47 = int_to_ptr.vmem [resolvable:$true] %s46
      %52 = dma.vmem_to_hbm [thread:$0]  %s47, 256, %s2, [#allocation6], 128, 128, 8
    $region20: #{tpu_custom_call.1} parent=1 // pred_fallthru
      _
    // Predicated region
    $region21: #{tpu_custom_call.1} parent=1 // pred_check
      _
    $region22: #{tpu_custom_call.1} parent=1 // pred_check_branch
      %54 = sbr.rel (0) target = $region24
    $region23: #{tpu_custom_call.1} parent=1 // pred_region
      %55 = dma.done [#allocation6], 256
    $region24: #{tpu_custom_call.1} parent=1 // pred_fallthru
      _
    %56 = vsyncpa [#allocation5], 1
    %57 = vsyncpa [#allocation6], 1

</llo_original>
